<compile_context>
chip_gen: v7x
topology: tpu7x:2x2x1
jax: 0.10.0
libtpu: 0.0.40
codegen_flags: <defaults>
</compile_context>

<pallas_src>
import functools

import jax
import jax.numpy as jnp
from jax import lax
from jax.experimental import pallas as pl
from jax.experimental.pallas import tpu as pltpu

MARGIN = 2.0
EPS = 1e-6  # matches torch.nn.functional.pairwise_distance default eps


def _round_up(x, m):
    return ((x + m - 1) // m) * m


def _contrastive_loss_kernel(o1_ref, o2_ref, lab_ref, out_ref, *,
                             n_rows, tile_n, blocks_per_split):
    s = pl.program_id(0)   # split index ("parallel" -> sharded across TCs on v7x)
    i = pl.program_id(1)   # block within split ("arbitrary" -> sequential accumulation)

    @pl.when(i == 0)
    def _():
        out_ref[0, 0] = jnp.float32(0.0)

    # Cast to f32 in-kernel (inputs arrive in their native dtype, e.g. bf16).
    o1 = o1_ref[...].astype(jnp.float32)     # (tile_n, D)
    o2 = o2_ref[...].astype(jnp.float32)     # (tile_n, D)
    lab = lab_ref[...].astype(jnp.float32)   # (tile_n, 1)

    diff = o1 - o2 + EPS                                     # (tile_n, D)
    sq = jnp.sum(diff * diff, axis=-1, keepdims=True)        # (tile_n, 1)  d^2 directly
    d = jnp.sqrt(sq)                                         # (tile_n, 1)  only for hinge
    hinge = jnp.maximum(MARGIN - d, 0.0)
    per_row = (1.0 - lab) * sq + lab * (hinge * hinge)       # (tile_n, 1)

    # Mask rows past the true batch size (ragged last tile -> contributes 0).
    block = s * blocks_per_split + i
    row = block * tile_n + lax.broadcasted_iota(jnp.int32, per_row.shape, 0)
    per_row = jnp.where(row < n_rows, per_row, 0.0)

    out_ref[0, 0] += jnp.sum(per_row)


def contrastive_loss(output1, output2, label, *, margin=MARGIN, tile_n=512):
    assert margin == MARGIN, "margin is baked into the kernel as a constant"
    n, d = output1.shape
    lab = label.reshape(n, 1)  # per-row broadcast against (tile_n, 1) distance

    # Tile the batch (sublane) axis; tile must be a multiple of 8.
    tile_n = max(8, min(_round_up(tile_n, 8), _round_up(n, 8)))
    num_blocks = pl.cdiv(n, tile_n)
    # Two-way split only when the block count divides evenly (avoids fully-OOB blocks);
    # gives both v7x TensorCores their own partial sum, is a no-op on v5e/v6e.
    num_splits = 2 if (num_blocks >= 2 and num_blocks % 2 == 0) else 1
    blocks_per_split = num_blocks // num_splits

    kernel = functools.partial(
        _contrastive_loss_kernel,
        n_rows=n, tile_n=tile_n, blocks_per_split=blocks_per_split)

    block_map = lambda s, i: (s * blocks_per_split + i, 0)

    partials = pl.pallas_call(
        kernel,
        out_shape=jax.ShapeDtypeStruct((num_splits, 1), jnp.float32),
        grid=(num_splits, blocks_per_split),
        in_specs=[
            pl.BlockSpec((tile_n, d), block_map),   # output1 tile (native dtype)
            pl.BlockSpec((tile_n, d), block_map),   # output2 tile (native dtype)
            pl.BlockSpec((tile_n, 1), block_map),   # label tile
        ],
        out_specs=pl.BlockSpec((1, 1), lambda s, i: (s, 0), memory_space=pltpu.SMEM),
        compiler_params=pltpu.CompilerParams(
            dimension_semantics=("parallel", "arbitrary")),
    )(output1, output2, lab)

    return jnp.sum(partials) / jnp.float32(n)


def _reference(output1, output2, label, margin=MARGIN):
    # Pure-JAX reference mirroring the PyTorch forward, for sanity checking.
    dist = jnp.sqrt(jnp.sum((output1 - output2 + EPS) ** 2, axis=-1))
    return jnp.mean((1.0 - label) * dist**2
                    + label * jnp.maximum(margin - dist, 0.0) ** 2)


if __name__ == "__main__":
    key = jax.random.PRNGKey(0)
    k1, k2, k3, k4, k5, k6 = jax.random.split(key, 6)

    # Check 1: ragged batch (N not a multiple of the tile), f32 inputs, small D.
    N1, D1 = 20, 32
    o1 = jax.random.normal(k1, (N1, D1), dtype=jnp.float32)
    o2 = jax.random.normal(k2, (N1, D1), dtype=jnp.float32)
    lab = jax.random.bernoulli(k3, 0.5, (N1,)).astype(jnp.float32)

    loss = contrastive_loss(o1, o2, lab, tile_n=8)
    jax.block_until_ready(loss)
    ref = _reference(o1, o2, lab)
    assert jnp.allclose(loss, ref, rtol=1e-5, atol=1e-5), (loss, ref)

    # Check 2: bf16 inputs (no wrapper upcast), lane-dense D, even block count so the
    # "parallel" split axis (v7x dual-TC path) is exercised.
    N2, D2 = 32, 256
    o1b = jax.random.normal(k4, (N2, D2), dtype=jnp.bfloat16)
    o2b = jax.random.normal(k5, (N2, D2), dtype=jnp.bfloat16)
    labb = jax.random.bernoulli(k6, 0.5, (N2,)).astype(jnp.float32)

    lossb = contrastive_loss(o1b, o2b, labb, tile_n=8)
    jax.block_until_ready(lossb)
    refb = _reference(o1b.astype(jnp.float32), o2b.astype(jnp.float32), labb)
    assert jnp.allclose(lossb, refb, rtol=1e-5, atol=1e-5), (lossb, refb)

    print("KERNEL_OK")
</pallas_src>

<mosaic_0001>
module attributes {stable_mosaic.version = 11 : i64} {
  func.func @_contrastive_loss_kernel(%arg0: i32, %arg1: i32, %arg2: memref<8x32xf32, #tpu.memory_space<vmem>>, %arg3: memref<8x32xf32, #tpu.memory_space<vmem>>, %arg4: memref<8x1xf32, #tpu.memory_space<vmem>>, %arg5: memref<1x1xf32, #tpu.memory_space<smem>>) attributes {dimension_semantics = [#tpu.dimension_semantics<parallel>, #tpu.dimension_semantics<arbitrary>], iteration_bounds = array<i64: 1, 3>, scalar_prefetch = 0 : i64, scratch_operands = 0 : i64, tpu.core_type = #tpu.core_type<tc>, window_params = [{transform_indices = @transform_0, window_bounds = array<i64: 8, 32>}, {transform_indices = @transform_1, window_bounds = array<i64: 8, 32>}, {transform_indices = @transform_2, window_bounds = array<i64: 8, 1>}, {transform_indices = @transform_3, window_bounds = array<i64: 1, 1>}]} {
    %c0_i32 = arith.constant 0 : i32
    %0 = arith.cmpi eq, %arg1, %c0_i32 : i32
    %1 = arith.extui %0 : i1 to i32
    %c0_i32_0 = arith.constant 0 : i32
    %2 = arith.cmpi ne, %1, %c0_i32_0 : i32
    scf.if %2 {
      %cst_16 = arith.constant 0.000000e+00 : f32
      %c0_17 = arith.constant 0 : index
      %c0_18 = arith.constant 0 : index
      %40 = memref.load %arg5[%c0_17, %c0_18] : memref<1x1xf32, #tpu.memory_space<smem>>
      memref.store %cst_16, %arg5[%c0_17, %c0_18] : memref<1x1xf32, #tpu.memory_space<smem>>
    } else {
    }
    %c0 = arith.constant 0 : index
    %c0_1 = arith.constant 0 : index
    %3 = vector.load %arg2[%c0, %c0_1] : memref<8x32xf32, #tpu.memory_space<vmem>>, vector<8x32xf32>
    %c0_2 = arith.constant 0 : index
    %c0_3 = arith.constant 0 : index
    %4 = vector.load %arg3[%c0_2, %c0_3] : memref<8x32xf32, #tpu.memory_space<vmem>>, vector<8x32xf32>
    %c0_4 = arith.constant 0 : index
    %c0_5 = arith.constant 0 : index
    %5 = vector.load %arg4[%c0_4, %c0_5] : memref<8x1xf32, #tpu.memory_space<vmem>>, vector<8x1xf32>
    %6 = arith.subf %3, %4 : vector<8x32xf32>
    %cst = arith.constant 9.99999997E-7 : f32
    %7 = vector.broadcast %cst : f32 to vector<8x32xf32>
    %8 = arith.addf %6, %7 : vector<8x32xf32>
    %9 = arith.mulf %8, %8 : vector<8x32xf32>
    %cst_6 = arith.constant dense<0.000000e+00> : vector<8xf32>
    %10 = vector.multi_reduction <add>, %9, %cst_6 [1] : vector<8x32xf32> to vector<8xf32>
    %11 = vector.shape_cast %10 : vector<8xf32> to vector<8x1xf32>
    %12 = math.sqrt %11 : vector<8x1xf32>
    %cst_7 = arith.constant 2.000000e+00 : f32
    %13 = vector.broadcast %cst_7 : f32 to vector<8x1xf32>
    %14 = arith.subf %13, %12 : vector<8x1xf32>
    %cst_8 = arith.constant 0.000000e+00 : f32
    %15 = vector.broadcast %cst_8 : f32 to vector<8x1xf32>
    %16 = arith.maximumf %14, %15 : vector<8x1xf32>
    %cst_9 = arith.constant 1.000000e+00 : f32
    %17 = vector.broadcast %cst_9 : f32 to vector<8x1xf32>
    %18 = arith.subf %17, %5 : vector<8x1xf32>
    %19 = arith.mulf %18, %11 : vector<8x1xf32>
    %20 = arith.mulf %16, %16 : vector<8x1xf32>
    %21 = arith.mulf %5, %20 : vector<8x1xf32>
    %22 = arith.addf %19, %21 : vector<8x1xf32>
    %c3_i32 = arith.constant 3 : i32
    %23 = arith.muli %arg0, %c3_i32 : i32
    %24 = arith.addi %23, %arg1 : i32
    %c8_i32 = arith.constant 8 : i32
    %25 = arith.muli %24, %c8_i32 : i32
    %26 = tpu.iota {dimensions = array<i32: 0>} : vector<8x1xi32>
    %27 = vector.broadcast %25 : i32 to vector<8x1xi32>
    %28 = arith.addi %27, %26 : vector<8x1xi32>
    %c20_i32 = arith.constant 20 : i32
    %29 = vector.broadcast %c20_i32 : i32 to vector<8x1xi32>
    %30 = arith.cmpi slt, %28, %29 : vector<8x1xi32>
    %cst_10 = arith.constant 0.000000e+00 : f32
    %31 = vector.broadcast %cst_10 : f32 to vector<8x1xf32>
    %32 = arith.select %30, %22, %31 : vector<8x1xi1>, vector<8x1xf32>
    %c0_11 = arith.constant 0 : index
    %c0_12 = arith.constant 0 : index
    %33 = memref.load %arg5[%c0_11, %c0_12] : memref<1x1xf32, #tpu.memory_space<smem>>
    %34 = vector.shape_cast %32 : vector<8x1xf32> to vector<1x8x1xf32>
    %cst_13 = arith.constant dense<0.000000e+00> : vector<1xf32>
    %35 = vector.multi_reduction <add>, %34, %cst_13 [1, 2] : vector<1x8x1xf32> to vector<1xf32>
    %36 = vector.shape_cast %35 : vector<1xf32> to vector<1x1x1xf32>
    %37 = vector.extract %36[0, 0, 0] : f32 from vector<1x1x1xf32>
    %38 = arith.addf %33, %37 : f32
    %c0_14 = arith.constant 0 : index
    %c0_15 = arith.constant 0 : index
    %39 = memref.load %arg5[%c0_14, %c0_15] : memref<1x1xf32, #tpu.memory_space<smem>>
    memref.store %38, %arg5[%c0_14, %c0_15] : memref<1x1xf32, #tpu.memory_space<smem>>
    return
  }
  func.func @transform_0(%arg0: i32, %arg1: i32) -> (i32, i32) {
    %c3_i32 = arith.constant 3 : i32
    %0 = arith.muli %arg0, %c3_i32 : i32
    %1 = arith.addi %0, %arg1 : i32
    %c0_i32 = arith.constant 0 : i32
    %c0_i32_0 = arith.constant 0 : i32
    return %1, %c0_i32 : i32, i32
  }
  func.func @transform_1(%arg0: i32, %arg1: i32) -> (i32, i32) {
    %c3_i32 = arith.constant 3 : i32
    %0 = arith.muli %arg0, %c3_i32 : i32
    %1 = arith.addi %0, %arg1 : i32
    %c0_i32 = arith.constant 0 : i32
    %c0_i32_0 = arith.constant 0 : i32
    return %1, %c0_i32 : i32, i32
  }
  func.func @transform_2(%arg0: i32, %arg1: i32) -> (i32, i32) {
    %c3_i32 = arith.constant 3 : i32
    %0 = arith.muli %arg0, %c3_i32 : i32
    %1 = arith.addi %0, %arg1 : i32
    %c0_i32 = arith.constant 0 : i32
    %c0_i32_0 = arith.constant 0 : i32
    return %1, %c0_i32 : i32, i32
  }
  func.func @transform_3(%arg0: i32, %arg1: i32) -> (i32, i32) {
    %c0_i32 = arith.constant 0 : i32
    %c0_i32_0 = arith.constant 0 : i32
    return %arg0, %c0_i32 : i32, i32
  }
}

</mosaic_0001>

<llo_original>
// kernel: tpu_custom_call.1
$region0: #{tpu_custom_call.1}
  #allocation0 [shape = 'u32[]', space=smem, size = 0x4, offset = 0x4, fixed_abs, tag = 'smem constant byte address 0x4 - core index']
  #allocation1 [shape = 'u32[144,128]{1,0:T(1,128)}', space=vmem, size = 0x12000, scoped, tag = 'internal scratch']
  %s0 = inlined_call_operand.vmem [shape: f32[20,32], index: 0, kind: input, shape index: {}]
  %s1 = inlined_call_operand.hbm [shape: f32[20,32], index: 1, kind: input, shape index: {}]
  %s2 = inlined_call_operand.vmem [shape: f32[20,1], index: 2, kind: input, shape index: {}]
  %s3 = inlined_call_operand.hbm [shape: f32[1,1], index: 3, kind: output, shape index: {}]
  %s4 = sld [smem:[#allocation0]]
  $region53: #{tpu_custom_call.1} parent=0
    _
  %s6 = ssub.s32 1, %s4
  %s7 = scalar_select 0, %s6, %s4
  $region1: #{tpu_custom_call.1} parent=0
    #allocation2 [shape = 'u8[8192]{0}', space=vmem, size = 0x2000, scoped, tag = 'input window, operand 1']
    #allocation3 [shape = 's32[2]{0}', space=sflag, size = 0x8, scoped, tag = 'scoped memory for tpu_custom_call.1']
    #allocation4 [shape = 's32[2]{0}', space=sflag, size = 0x8, scoped, tag = 'scoped memory for tpu_custom_call.1']
    #allocation5 [shape = 'u8[512]{0}', space=smem, size = 0x200, scoped, tag = 'output window, operand 0, single buffered']
    %8 = vsyncpa [#allocation3], 0
    %s9 = scalar_lea.sflag [#allocation3], 1
    %10 = vsyncpa %s9, 0
    %11 = vsyncpa [#allocation4], 0
    loop: start=0, step=1, limit=5
    $region2: #{tpu_custom_call.1} parent=1 // loop_pre_header
      _
    $region3: #{tpu_custom_call.1} parent=1 // loop_header
      %s13 = sphi 0, %s17
      %p14 = scmp.ge.s32.totalorder %s13, 5
      %s20 = sphi 0, %s32
      %s21 = sphi 0, %s28
      %s22 = sphi 0, %s20
      %s23 = sphi 0, %s21
      %s24 = sphi 0, %s22
      %s25 = sphi 0, %s23
      %s39 = sphi 0, %s41
      %s42 = sphi 0, %s39
      %s43 = sphi 0, %s42
      %s59 = sphi 0, %s43
      %s69 = sphi 0, %s71
      %s72 = sphi 0, %s69
      %s73 = sphi 0, %s72
      %s89 = sphi 0, %s73
      %s99 = sphi 0, %s101
      %s102 = sphi 0, %s99
      %s103 = sphi 0, %s102
      %s119 = sphi 0, %s103
      %s125 = sphi 0, %s127
      %s128 = sphi 0, %s125
      %s129 = sphi 0, %s128
      %s145 = sphi 0, %s129
    $region4: #{tpu_custom_call.1} parent=1 // loop_header_branch
      %16 = sbr.rel (%p14) target = $region8
    $region5: #{tpu_custom_call.1} parent=1 // loop_body
      %s18 = ssub.s32 %s13, 1
      %s19 = ssub.s32 %s13, 2
      %s26 = sadd.s32 1, %s21
      %p27 = scmp.ge.s32.totalorder %s26, 3
      %s28 = scalar_select %p27, 0, %s26
      %s29 = sadd.s32 1, %s20
      %s30 = scalar_select %p27, %s29, %s20
      %p31 = scmp.ge.s32.totalorder %s30, 1
      %s32 = scalar_select %p31, 0, %s30
      %s33 = smul.u32 %s20, 3
      %s34 = sadd.s32 %s33, %s21
      %s35 = smul.u32 %s32, 3
      %s36 = sadd.s32 %s35, %s28
      %s37 = ssub.s32 %s34, %s36
      %p38 = scmp.eq.s32.totalorder %s37, 0
      %s40 = sadd.s32 %s39, 1
      %s41 = scalar_select %p38, %s39, %s40
      %p44 = pneg %p38
      %p45 = scmp.eq.s32.totalorder %s13, 2
      %p46 = por %p44, %p45
      %p47 = scmp.ne.s32.totalorder %s39, %s42
      %p48 = scmp.eq.s32.totalorder %s13, 0
      %p49 = por %p47, %p48
      %p50 = scmp.ne.s32.totalorder %s39, %s42
      %p51 = scmp.eq.s32.totalorder %s18, 2
      %p52 = por %p50, %p51
      %p53 = scmp.ne.s32.totalorder %s42, %s43
      %p54 = scmp.eq.s32.totalorder %s18, 0
      %p55 = por %p53, %p54
      %p56 = scmp.ne.s32.totalorder %s42, %s43
      %p57 = scmp.eq.s32.totalorder %s19, 2
      %p58 = por %p56, %p57
      %p60 = scmp.ne.s32.totalorder %s43, %s59
      %p61 = scmp.eq.s32.totalorder %s19, 0
      %p62 = por %p60, %p61
      %s63 = smul.u32 %s20, 3
      %s64 = sadd.s32 %s63, %s21
      %s65 = smul.u32 %s32, 3
      %s66 = sadd.s32 %s65, %s28
      %s67 = ssub.s32 %s64, %s66
      %p68 = scmp.eq.s32.totalorder %s67, 0
      %s70 = sadd.s32 %s69, 1
      %s71 = scalar_select %p68, %s69, %s70
      %p74 = pneg %p68
      %p75 = scmp.eq.s32.totalorder %s13, 2
      %p76 = por %p74, %p75
      %p77 = scmp.ne.s32.totalorder %s69, %s72
      %p78 = scmp.eq.s32.totalorder %s13, 0
      %p79 = por %p77, %p78
      %p80 = scmp.ne.s32.totalorder %s69, %s72
      %p81 = scmp.eq.s32.totalorder %s18, 2
      %p82 = por %p80, %p81
      %p83 = scmp.ne.s32.totalorder %s72, %s73
      %p84 = scmp.eq.s32.totalorder %s18, 0
      %p85 = por %p83, %p84
      %p86 = scmp.ne.s32.totalorder %s72, %s73
      %p87 = scmp.eq.s32.totalorder %s19, 2
      %p88 = por %p86, %p87
      %p90 = scmp.ne.s32.totalorder %s73, %s89
      %p91 = scmp.eq.s32.totalorder %s19, 0
      %p92 = por %p90, %p91
      %s93 = smul.u32 %s20, 3
      %s94 = sadd.s32 %s93, %s21
      %s95 = smul.u32 %s32, 3
      %s96 = sadd.s32 %s95, %s28
      %s97 = ssub.s32 %s94, %s96
      %p98 = scmp.eq.s32.totalorder %s97, 0
      %s100 = sadd.s32 %s99, 1
      %s101 = scalar_select %p98, %s99, %s100
      %p104 = pneg %p98
      %p105 = scmp.eq.s32.totalorder %s13, 2
      %p106 = por %p104, %p105
      %p107 = scmp.ne.s32.totalorder %s99, %s102
      %p108 = scmp.eq.s32.totalorder %s13, 0
      %p109 = por %p107, %p108
      %p110 = scmp.ne.s32.totalorder %s99, %s102
      %p111 = scmp.eq.s32.totalorder %s18, 2
      %p112 = por %p110, %p111
      %p113 = scmp.ne.s32.totalorder %s102, %s103
      %p114 = scmp.eq.s32.totalorder %s18, 0
      %p115 = por %p113, %p114
      %p116 = scmp.ne.s32.totalorder %s102, %s103
      %p117 = scmp.eq.s32.totalorder %s19, 2
      %p118 = por %p116, %p117
      %p120 = scmp.ne.s32.totalorder %s103, %s119
      %p121 = scmp.eq.s32.totalorder %s19, 0
      %p122 = por %p120, %p121
      %s123 = ssub.s32 %s20, %s32
      %p124 = scmp.eq.s32.totalorder %s123, 0
      %s126 = sadd.s32 %s125, 1
      %s127 = scalar_select %p124, %s125, %s126
      %p130 = pneg %p124
      %p131 = scmp.eq.s32.totalorder %s13, 2
      %p132 = por %p130, %p131
      %p133 = scmp.ne.s32.totalorder %s125, %s128
      %p134 = scmp.eq.s32.totalorder %s13, 0
      %p135 = por %p133, %p134
      %p136 = scmp.ne.s32.totalorder %s125, %s128
      %p137 = scmp.eq.s32.totalorder %s18, 2
      %p138 = por %p136, %p137
      %p139 = scmp.ne.s32.totalorder %s128, %s129
      %p140 = scmp.eq.s32.totalorder %s18, 0
      %p141 = por %p139, %p140
      %p142 = scmp.ne.s32.totalorder %s128, %s129
      %p143 = scmp.eq.s32.totalorder %s19, 2
      %p144 = por %p142, %p143
      %p146 = scmp.ne.s32.totalorder %s129, %s145
      %p147 = scmp.eq.s32.totalorder %s19, 0
      %p148 = por %p146, %p147
      %p149 = scmp.le.s32.totalorder 1, %s13
      %p150 = scmp.lt.s32.totalorder %s13, 4
      %p151 = pnand %p149, %p150
      %p152 = pneg %p151
      // Predicated region
      $region9: #{tpu_custom_call.1} parent=5 // pred_check
        _
      $region10: #{tpu_custom_call.1} parent=5 // pred_check_branch
        %154 = sbr.rel (%p151) target = $region12
      $region11: #{tpu_custom_call.1} parent=5 // pred_region
        %s155 = ssub.s32 %s13, 1
      $region12: #{tpu_custom_call.1} parent=5 // pred_fallthru
        _
      %p156 = scmp.lt.s32.totalorder %s13, 3
      // Predicated region
      $region13: #{tpu_custom_call.1} parent=5 // pred_check
        %p157 = pneg %p156
      $region14: #{tpu_custom_call.1} parent=5 // pred_check_branch
        %159 = sbr.rel (%p157) target = $region16
      $region15: #{tpu_custom_call.1} parent=5 // pred_region
        // Predicated region
        $region17: #{tpu_custom_call.1} parent=15 // pred_check
          %p160 = pneg %p49
        $region18: #{tpu_custom_call.1} parent=15 // pred_check_branch
          %162 = sbr.rel (%p160) target = $region20
        $region19: #{tpu_custom_call.1} parent=15 // pred_region
          %s163 = smul.u32 %s20, 3
          %s164 = sadd.s32 %s163, %s21
          %p165 = scmp.lt.s32.totalorder %s164, 2
          %s166 = scalar_select %p165, %s164, 2
          %s167 = smul.addr %s166, 8
          %s168 = scalar_lea.vmem %s0, %s167
          %s169 = smul.u32 %s20, 3
          %s170 = sadd.s32 %s169, %s21
        $region20: #{tpu_custom_call.1} parent=15 // pred_fallthru
          _
        // Predicated region
        $region21: #{tpu_custom_call.1} parent=15 // pred_check
          %p171 = pneg %p79
        $region22: #{tpu_custom_call.1} parent=15 // pred_check_branch
          %173 = sbr.rel (%p171) target = $region24
        $region23: #{tpu_custom_call.1} parent=15 // pred_region
          %s174 = sand.u32 %s69, 1
          %s175 = scalar_lea.sflag [#allocation3], %s174
          %s176 = sand.u32 %s69, 1
          %s177 = smul.addr %s176, 8
          %s178 = scalar_lea.vmem [#allocation2], %s177
          %s179 = smul.u32 %s20, 3
          %s180 = sadd.s32 %s179, %s21
          %s182 = ssub.s32 128, 128
          %183 = vsyncadd %s175, %s182
          %s184 = smul.addr %s180, 128
          %s185 = scalar_lea.hbm %s1, %s184
          %s187 = sshll.u32 %s178, 4
          %s188 = int_to_ptr.vmem [resolvable:$true] %s187
          %190 = dma.hbm_to_vmem [thread:$0]  %s185, 128, %s188, %s175
        $region24: #{tpu_custom_call.1} parent=15 // pred_fallthru
          _
        // Predicated region
        $region25: #{tpu_custom_call.1} parent=15 // pred_check
          %p191 = pneg %p109
        $region26: #{tpu_custom_call.1} parent=15 // pred_check_branch
          %193 = sbr.rel (%p191) target = $region28
        $region27: #{tpu_custom_call.1} parent=15 // pred_region
          %s194 = smul.u32 %s20, 3
          %s195 = sadd.s32 %s194, %s21
          %p196 = scmp.lt.s32.totalorder %s195, 2
          %s197 = scalar_select %p196, %s195, 2
          %s198 = smul.addr %s197, 8
          %s199 = scalar_lea.vmem %s2, %s198
          %s200 = smul.u32 %s20, 3
          %s201 = sadd.s32 %s200, %s21
        $region28: #{tpu_custom_call.1} parent=15 // pred_fallthru
          _
      $region16: #{tpu_custom_call.1} parent=5 // pred_fallthru
        _
      %p202 = scmp.le.s32.totalorder 1, %s13
      %p203 = scmp.lt.s32.totalorder %s13, 4
      %p204 = pnand %p202, %p203
      %p205 = pneg %p204
      // Predicated region
      $region29: #{tpu_custom_call.1} parent=5 // pred_check
        _
      $region30: #{tpu_custom_call.1} parent=5 // pred_check_branch
        %207 = sbr.rel (%p204) target = $region32
      $region31: #{tpu_custom_call.1} parent=5 // pred_region
        %s208 = ssub.s32 %s13, 1
        %s209 = sand.u32 %s72, 1
        %s210 = scalar_lea.sflag [#allocation3], %s209
        %s211 = sand.u32 %s72, 1
        %s212 = smul.addr %s211, 8
        %s213 = scalar_lea.vmem [#allocation2], %s212
        // Predicated region
        $region33: #{tpu_custom_call.1} parent=31 // pred_check
          %p214 = pneg %p85
        $region34: #{tpu_custom_call.1} parent=31 // pred_check_branch
          %216 = sbr.rel (%p214) target = $region36
        $region35: #{tpu_custom_call.1} parent=31 // pred_region
          %217 = dma.done %s210, 128
        $region36: #{tpu_custom_call.1} parent=31 // pred_fallthru
          _
        %s218 = smul.u32 %s22, 3
        %s219 = sadd.s32 %s218, %s23
        %p220 = scmp.lt.s32.totalorder %s219, 2
        %s221 = scalar_select %p220, %s219, 2
        %s222 = smul.addr %s221, 8
        %s223 = scalar_lea.vmem %s0, %s222
        %p224 = pneg %p55
        %p225 = pneg %p52
        %s226 = sand.u32 %s72, 1
        %s227 = scalar_lea.sflag [#allocation3], %s226
        %s228 = sand.u32 %s72, 1
        %s229 = smul.addr %s228, 8
        %s230 = scalar_lea.vmem [#allocation2], %s229
        %p231 = pneg %p85
        %p232 = pneg %p82
        %s233 = smul.u32 %s22, 3
        %s234 = sadd.s32 %s233, %s23
        %p235 = scmp.lt.s32.totalorder %s234, 2
        %s236 = scalar_select %p235, %s234, 2
        %s237 = smul.addr %s236, 8
        %s238 = scalar_lea.vmem %s2, %s237
        %p239 = pneg %p115
        %p240 = pneg %p112
        %p241 = pneg %p141
        %p242 = pneg %p138
        %s243 = smul.u32 %s22, 3
        %s244 = sadd.s32 %s243, %s23
        %p245 = scmp.lt.s32.totalorder %s244, 2
        %s246 = scalar_select %p245, %s244, 2
        %s247 = smul.addr %s246, 8
        %s248 = scalar_lea.vmem %s0, %s247
        %s249 = smul.u32 %s22, 3
        %s250 = sadd.s32 %s249, %s23
        %s251 = smul.u32 %s22, 3
        %s252 = sadd.s32 %s251, %s23
        %s253 = smul.u32 %s22, 3
        %s254 = sadd.s32 %s253, %s23
        %p255 = scmp.lt.s32.totalorder %s254, 2
        %s256 = scalar_select %p255, %s254, 2
        %s257 = smul.addr %s256, 8
        %s258 = scalar_lea.vmem %s2, %s257
        %s259 = smul.u32 %s22, 3
        %s260 = sadd.s32 %s259, %s23
        %p261 = scmp.eq.s32.totalorder %s23, 0
        // Predicated region
        $region37: #{tpu_custom_call.1} parent=31 // pred_check
          %p262 = pneg %p261
        $region38: #{tpu_custom_call.1} parent=31 // pred_check_branch
          %264 = sbr.rel (%p262) target = $region40
        $region39: #{tpu_custom_call.1} parent=31 // pred_region
          %s265 = scalar_lea.smem [#allocation5], 0
          %266 = sst [smem:[%s265]] 0.0
        $region40: #{tpu_custom_call.1} parent=31 // pred_fallthru
          _
        %v267 = vld [vmem:[%s248] sm:$0xff]
        %v268 = vld [vmem:[%s213] sm:$0xff]
        %v269 = vld [vmem:[%s258] sm:$0xff]
        %v270 = vsub.f32 %v267, %v268
        %v271 = vadd.f32 %v270, 1e-06
        %v272 = vmul.f32 %v271, %v271
        %vm273 = vcmask 261120
        %v274 = vsel %vm273, %v272, 0.0
        %275 = vadd.xlane.f32.xlu0 %v274
        %v276 = vpop.xlane.xlu0 %275
        %v277 = vrsqrt.pop %v276
        %v278 = vmul.f32 %v276, %v277
        %vm279 = vcmp.eq.f32.partialorder %v276, inf
        %v280 = vsel %vm279, %v276, %v278
        %vm281 = vcmp.eq.f32.partialorder %v276, 0.0
        %v282 = vand.u32 %v276, 2147483648
        %v283 = vsel %vm281, %v282, %v280
        %v284 = vsub.f32 2.0, %v283
        %v285 = vmax.f32 %v284, 0.0
        %v286 = vsub.f32 1.0, %v269
        %v287 = vmul.f32 %v286, %v276
        %v288 = vmul.f32 %v285, %v285
        %v289 = vmul.f32 %v269, %v288
        %v290 = vadd.f32 %v287, %v289
        %s291 = smul.u32 %s22, 3
        %s292 = sadd.s32 %s291, %s23
        %s293 = smul.u32 %s292, 8
        %v294 = vlaneseq
        %v295 = vshrl.u32 %v294, 7
        %v296 = vstv %s293
        %v297 = vadd.s32 %v296, %v295
        %vm298 = vcmp.lt.s32.totalorder %v297, 20
        %v299 = vsel %vm298, %v290, 0.0
        %s300 = sld [smem:[#allocation5]]
        %vm301 = vcmask 7168
        %v302 = vsel %vm301, %v299, 0.0
        %303 = vadd.xlane.f32.xlu0 %v302
        %v304 = vpop.xlane.xlu0 %303
        %v305 = vrot.slane %v304, 4
        %v306 = vadd.f32 %v304, %v305
        %v307 = vrot.slane %v306, 2
        %v308 = vadd.f32 %v306, %v307
        %v309 = vrot.slane %v308, 1
        %v310 = vadd.f32 %v308, %v309
        %s311 = vtos %v310
        %s312 = sadd.f32 %s300, %s311
        %s313 = scalar_lea.smem [#allocation5], 0
        %314 = sst [smem:[%s313]] %s312
        // Predicated region
        $region41: #{tpu_custom_call.1} parent=31 // pred_check
          %p315 = pneg %p138
        $region42: #{tpu_custom_call.1} parent=31 // pred_check_branch
          %317 = sbr.rel (%p315) target = $region44
        $region43: #{tpu_custom_call.1} parent=31 // pred_region
          %s319 = ssub.s32 16, 16
          %320 = vsyncadd [#allocation4], %s319
          %s321 = smul.addr %s22, 16
          %s322 = scalar_lea.hbm %s3, %s321
          %325 = dma.smem_to_hbm [#allocation5], 16, %s322, [#allocation4]
        $region44: #{tpu_custom_call.1} parent=31 // pred_fallthru
          _
        // Predicated region
        $region45: #{tpu_custom_call.1} parent=31 // pred_check
          %p326 = pneg %p138
        $region46: #{tpu_custom_call.1} parent=31 // pred_check_branch
          %328 = sbr.rel (%p326) target = $region48
        $region47: #{tpu_custom_call.1} parent=31 // pred_region
          %329 = dma.done [#allocation4], 16
        $region48: #{tpu_custom_call.1} parent=31 // pred_fallthru
          _
        %330 = sfence
      $region32: #{tpu_custom_call.1} parent=5 // pred_fallthru
        _
      %p331 = scmp.le.s32.totalorder 2, %s13
      // Predicated region
      $region49: #{tpu_custom_call.1} parent=5 // pred_check
        %p332 = pneg %p331
      $region50: #{tpu_custom_call.1} parent=5 // pred_check_branch
        %334 = sbr.rel (%p332) target = $region52
      $region51: #{tpu_custom_call.1} parent=5 // pred_region
        %s335 = ssub.s32 %s13, 2
      $region52: #{tpu_custom_call.1} parent=5 // pred_fallthru
        _
    $region6: #{tpu_custom_call.1} parent=1 // loop_footer
      %s17 = sadd.s32 1, %s13
    $region7: #{tpu_custom_call.1} parent=1 // loop_footer_branch
      %12 = sbr.rel target = $region3
    $region8: #{tpu_custom_call.1} parent=1 // loop_exit
      _
    %336 = vsyncpa [#allocation3], 1
    %s337 = scalar_lea.sflag [#allocation3], 1
    %338 = vsyncpa %s337, 1
    %339 = vsyncpa [#allocation4], 1
    %s340 = scalar_lea.sflag [#allocation4], 1
    %341 = vsyncpa %s340, 1

</llo_original>
